<compile_context>
chip_gen: v7x
topology: tpu7x:2x2x1
jax: 0.10.0
libtpu: 0.0.40
codegen_flags: <defaults>
</compile_context>

<pallas_src>
import jax
import jax.numpy as jnp
from jax.experimental import pallas as pl
from jax.experimental.pallas import tpu as pltpu


def actor_critic_kernel(x_ref, w1_ref, b1_ref, w2_ref, b2_ref, wh_ref, bh_ref,
                        out_ref):
    # Feature-major: x is (in, TB) bf16, weights are (out, in) bf16, biases (out, 1) f32.
    x = x_ref[...]
    # f1 + relu
    h1 = jnp.dot(w1_ref[...], x, preferred_element_type=jnp.float32) + b1_ref[...]
    h1 = jnp.maximum(h1, 0.0).astype(jnp.bfloat16)                 # (16, TB)
    # f2 + relu
    h2 = jnp.dot(w2_ref[...], h1, preferred_element_type=jnp.float32) + b2_ref[...]
    h2 = jnp.maximum(h2, 0.0).astype(jnp.bfloat16)                 # (32, TB)
    # fused actor+critic head -> single lane-dense store
    out = jnp.dot(wh_ref[...], h2, preferred_element_type=jnp.float32) + bh_ref[...]
    out_ref[...] = out.astype(out_ref.dtype)                       # (out+1, TB)


def _round_up(n, m):
    return ((n + m - 1) // m) * m


def actor_critic_forward(x, params, *, block_b=4096):
    """x: (B, input_shape) f32.  params: PyTorch-native (out, in) weights, (out,) biases.

    Returns (actor_logits (B, out), critic_value (B, 1)) in f32.
    """
    B, in_dim = x.shape
    n_act = params["wa"].shape[0]
    n_out = n_act + 1                                              # fused head width

    # ---- fused actor+critic head (done once in the wrapper) ----
    wh = jnp.concatenate([params["wa"], params["wc"]], axis=0)     # (n_out, 32)
    bh = jnp.concatenate([params["ba"], params["bc"]], axis=0)     # (n_out,)

    # ---- batch tiling (batch on the lane axis, always a multiple of 128) ----
    B128 = _round_up(B, 128)
    TB = min(_round_up(block_b, 128), B128)
    n_blocks = (B128 + TB - 1) // TB
    Bp = n_blocks * TB
    x_fm = x.T.astype(jnp.bfloat16)                                # (in, B), bf16 HBM traffic
    if Bp != B:
        x_fm = jnp.pad(x_fm, ((0, 0), (0, Bp - B)))                # pad cols, sliced off later

    w1 = params["w1"].astype(jnp.bfloat16)                         # (16, in)
    w2 = params["w2"].astype(jnp.bfloat16)                         # (32, 16)
    whb = wh.astype(jnp.bfloat16)                                  # (n_out, 32)
    b1 = params["b1"].reshape(-1, 1)                               # (16, 1) f32
    b2 = params["b2"].reshape(-1, 1)                               # (32, 1) f32
    bh2 = bh.reshape(-1, 1)                                        # (n_out, 1) f32

    def resident(shape):
        # Weights/biases: same block for every grid step -> stay VMEM-resident.
        return pl.BlockSpec(shape, lambda i: (0, 0))

    out_fm = pl.pallas_call(
        actor_critic_kernel,
        out_shape=jax.ShapeDtypeStruct((n_out, Bp), jnp.float32),
        grid=(n_blocks,),
        in_specs=[
            pl.BlockSpec((in_dim, TB), lambda i: (0, i)),          # x tile (batch-sliced)
            resident(w1.shape), resident(b1.shape),
            resident(w2.shape), resident(b2.shape),
            resident(whb.shape), resident(bh2.shape),
        ],
        out_specs=pl.BlockSpec((n_out, TB), lambda i: (0, i)),     # lane-dense output slab
        compiler_params=pltpu.CompilerParams(
            dimension_semantics=("parallel",)),                    # shard batch across TCs (v7x)
    )(x_fm, w1, b1, w2, b2, whb, bh2)

    out_fm = out_fm[:, :B]
    actor = out_fm[:n_act].T                                       # (B, n_act)
    critic = out_fm[n_act:].T                                      # (B, 1)
    return actor, critic


def init_params(key, input_shape, output_shape):
    """Deterministic init mimicking torch.nn.Linear's U(-1/sqrt(fan_in), 1/sqrt(fan_in)).

    Weights kept in PyTorch-native (out_features, in_features) orientation.
    """
    def linear(k, fan_in, fan_out):
        kw, kb = jax.random.split(k)
        bound = 1.0 / jnp.sqrt(jnp.float32(fan_in))
        w = jax.random.uniform(kw, (fan_out, fan_in), jnp.float32, -bound, bound)
        b = jax.random.uniform(kb, (fan_out,), jnp.float32, -bound, bound)
        return w, b

    k1, k2, k3, k4 = jax.random.split(key, 4)
    w1, b1 = linear(k1, input_shape, 16)
    w2, b2 = linear(k2, 16, 32)
    wa, ba = linear(k3, 32, output_shape)
    wc, bc = linear(k4, 32, 1)
    return dict(w1=w1, b1=b1, w2=w2, b2=b2, wa=wa, ba=ba, wc=wc, bc=bc)


def reference_forward(x, p):
    """Pure-JAX reference with the same bf16-input / f32-accumulate dtype flow."""
    bf = lambda a: a.astype(jnp.bfloat16)
    h1 = jnp.maximum(
        jnp.dot(bf(x), bf(p["w1"]).T, preferred_element_type=jnp.float32) + p["b1"], 0.0)
    h2 = jnp.maximum(
        jnp.dot(bf(h1), bf(p["w2"]).T, preferred_element_type=jnp.float32) + p["b2"], 0.0)
    actor = jnp.dot(bf(h2), bf(p["wa"]).T, preferred_element_type=jnp.float32) + p["ba"]
    critic = jnp.dot(bf(h2), bf(p["wc"]).T, preferred_element_type=jnp.float32) + p["bc"]
    return actor, critic


if __name__ == "__main__":
    input_shape = 4      # e.g. CartPole-like observation dim
    output_shape = 2     # action dim
    batch = 8

    key = jax.random.PRNGKey(0)
    kx, kp = jax.random.split(key)
    x = jax.random.normal(kx, (batch, input_shape), jnp.float32)
    params = init_params(kp, input_shape, output_shape)

    # Small-batch path (single padded tile).
    actor_logits, critic_value = actor_critic_forward(x, params)
    jax.block_until_ready((actor_logits, critic_value))
    ref_a, ref_c = reference_forward(x, params)
    assert actor_logits.shape == (batch, output_shape)
    assert critic_value.shape == (batch, 1)
    assert jnp.allclose(actor_logits, ref_a, atol=2e-3, rtol=2e-3)
    assert jnp.allclose(critic_value, ref_c, atol=2e-3, rtol=2e-3)

    # Larger batch exercising the batch grid (multiple tiles + tail padding).
    batch2 = 320
    x2 = jax.random.normal(jax.random.PRNGKey(1), (batch2, input_shape), jnp.float32)
    a2, c2 = actor_critic_forward(x2, params, block_b=128)
    jax.block_until_ready((a2, c2))
    r_a2, r_c2 = reference_forward(x2, params)
    assert a2.shape == (batch2, output_shape) and c2.shape == (batch2, 1)
    assert jnp.allclose(a2, r_a2, atol=2e-3, rtol=2e-3)
    assert jnp.allclose(c2, r_c2, atol=2e-3, rtol=2e-3)

    print("KERNEL_OK")
</pallas_src>

<mosaic_0001>
module attributes {stable_mosaic.version = 11 : i64} {
  func.func @actor_critic_kernel(%arg0: i32, %arg1: memref<4x128xbf16, #tpu.memory_space<vmem>>, %arg2: memref<16x4xbf16, #tpu.memory_space<vmem>>, %arg3: memref<16x1xf32, #tpu.memory_space<vmem>>, %arg4: memref<32x16xbf16, #tpu.memory_space<vmem>>, %arg5: memref<32x1xf32, #tpu.memory_space<vmem>>, %arg6: memref<3x32xbf16, #tpu.memory_space<vmem>>, %arg7: memref<3x1xf32, #tpu.memory_space<vmem>>, %arg8: memref<3x128xf32, #tpu.memory_space<vmem>>) attributes {dimension_semantics = [#tpu.dimension_semantics<parallel>], iteration_bounds = array<i64: 1>, scalar_prefetch = 0 : i64, scratch_operands = 0 : i64, tpu.core_type = #tpu.core_type<tc>, window_params = [{transform_indices = @transform_0, window_bounds = array<i64: 4, 128>}, {pipeline_mode = #tpu.pipeline_mode<synchronous>, transform_indices = @transform_1, window_bounds = array<i64: 16, 4>}, {pipeline_mode = #tpu.pipeline_mode<synchronous>, transform_indices = @transform_2, window_bounds = array<i64: 16, 1>}, {pipeline_mode = #tpu.pipeline_mode<synchronous>, transform_indices = @transform_3, window_bounds = array<i64: 32, 16>}, {pipeline_mode = #tpu.pipeline_mode<synchronous>, transform_indices = @transform_4, window_bounds = array<i64: 32, 1>}, {pipeline_mode = #tpu.pipeline_mode<synchronous>, transform_indices = @transform_5, window_bounds = array<i64: 3, 32>}, {pipeline_mode = #tpu.pipeline_mode<synchronous>, transform_indices = @transform_6, window_bounds = array<i64: 3, 1>}, {transform_indices = @transform_7, window_bounds = array<i64: 3, 128>}]} {
    %c0 = arith.constant 0 : index
    %c0_0 = arith.constant 0 : index
    %0 = vector.load %arg1[%c0, %c0_0] : memref<4x128xbf16, #tpu.memory_space<vmem>>, vector<4x128xbf16>
    %c0_1 = arith.constant 0 : index
    %c0_2 = arith.constant 0 : index
    %1 = vector.load %arg2[%c0_1, %c0_2] : memref<16x4xbf16, #tpu.memory_space<vmem>>, vector<16x4xbf16>
    %cst = arith.constant dense<0.000000e+00> : vector<16x128xf32>
    %2 = tpu.matmul %1, %0, %cst {dimension_numbers = #tpu.dot_dimension_numbers<[1], [0], [0], [1], [0, 0, 1, 1], [], []>} : vector<16x4xbf16>, vector<4x128xbf16>, vector<16x128xf32> -> vector<16x128xf32>
    %c0_3 = arith.constant 0 : index
    %c0_4 = arith.constant 0 : index
    %3 = vector.load %arg3[%c0_3, %c0_4] : memref<16x1xf32, #tpu.memory_space<vmem>>, vector<16x1xf32>
    %4 = vector.broadcast %3 : vector<16x1xf32> to vector<16x128xf32>
    %5 = arith.addf %2, %4 : vector<16x128xf32>
    %cst_5 = arith.constant 0.000000e+00 : f32
    %6 = vector.broadcast %cst_5 : f32 to vector<16x128xf32>
    %7 = arith.maximumf %5, %6 : vector<16x128xf32>
    %8 = arith.truncf %7 : vector<16x128xf32> to vector<16x128xbf16>
    %c0_6 = arith.constant 0 : index
    %c0_7 = arith.constant 0 : index
    %9 = vector.load %arg4[%c0_6, %c0_7] : memref<32x16xbf16, #tpu.memory_space<vmem>>, vector<32x16xbf16>
    %cst_8 = arith.constant dense<0.000000e+00> : vector<32x128xf32>
    %10 = tpu.matmul %9, %8, %cst_8 {dimension_numbers = #tpu.dot_dimension_numbers<[1], [0], [0], [1], [0, 0, 1, 1], [], []>} : vector<32x16xbf16>, vector<16x128xbf16>, vector<32x128xf32> -> vector<32x128xf32>
    %c0_9 = arith.constant 0 : index
    %c0_10 = arith.constant 0 : index
    %11 = vector.load %arg5[%c0_9, %c0_10] : memref<32x1xf32, #tpu.memory_space<vmem>>, vector<32x1xf32>
    %12 = vector.broadcast %11 : vector<32x1xf32> to vector<32x128xf32>
    %13 = arith.addf %10, %12 : vector<32x128xf32>
    %cst_11 = arith.constant 0.000000e+00 : f32
    %14 = vector.broadcast %cst_11 : f32 to vector<32x128xf32>
    %15 = arith.maximumf %13, %14 : vector<32x128xf32>
    %16 = arith.truncf %15 : vector<32x128xf32> to vector<32x128xbf16>
    %c0_12 = arith.constant 0 : index
    %c0_13 = arith.constant 0 : index
    %17 = vector.load %arg6[%c0_12, %c0_13] : memref<3x32xbf16, #tpu.memory_space<vmem>>, vector<3x32xbf16>
    %cst_14 = arith.constant dense<0.000000e+00> : vector<3x128xf32>
    %18 = tpu.matmul %17, %16, %cst_14 {dimension_numbers = #tpu.dot_dimension_numbers<[1], [0], [0], [1], [0, 0, 1, 1], [], []>} : vector<3x32xbf16>, vector<32x128xbf16>, vector<3x128xf32> -> vector<3x128xf32>
    %c0_15 = arith.constant 0 : index
    %c0_16 = arith.constant 0 : index
    %19 = vector.load %arg7[%c0_15, %c0_16] : memref<3x1xf32, #tpu.memory_space<vmem>>, vector<3x1xf32>
    %20 = vector.broadcast %19 : vector<3x1xf32> to vector<3x128xf32>
    %21 = arith.addf %18, %20 : vector<3x128xf32>
    %c0_17 = arith.constant 0 : index
    %c0_18 = arith.constant 0 : index
    %22 = vector.load %arg8[%c0_17, %c0_18] : memref<3x128xf32, #tpu.memory_space<vmem>>, vector<3x128xf32>
    tpu.vector_store %arg8[%c0_17, %c0_18], %21 {strides = array<i32>} : memref<3x128xf32, #tpu.memory_space<vmem>>, vector<3x128xf32>,
    return
  }
  func.func @transform_0(%arg0: i32) -> (i32, i32) {
    %c0_i32 = arith.constant 0 : i32
    %c0_i32_0 = arith.constant 0 : i32
    return %c0_i32, %arg0 : i32, i32
  }
  func.func @transform_1(%arg0: i32) -> (i32, i32) {
    %c0_i32 = arith.constant 0 : i32
    %c0_i32_0 = arith.constant 0 : i32
    %c0_i32_1 = arith.constant 0 : i32
    return %c0_i32, %c0_i32_0 : i32, i32
  }
  func.func @transform_2(%arg0: i32) -> (i32, i32) {
    %c0_i32 = arith.constant 0 : i32
    %c0_i32_0 = arith.constant 0 : i32
    %c0_i32_1 = arith.constant 0 : i32
    return %c0_i32, %c0_i32_0 : i32, i32
  }
  func.func @transform_3(%arg0: i32) -> (i32, i32) {
    %c0_i32 = arith.constant 0 : i32
    %c0_i32_0 = arith.constant 0 : i32
    %c0_i32_1 = arith.constant 0 : i32
    return %c0_i32, %c0_i32_0 : i32, i32
  }
  func.func @transform_4(%arg0: i32) -> (i32, i32) {
    %c0_i32 = arith.constant 0 : i32
    %c0_i32_0 = arith.constant 0 : i32
    %c0_i32_1 = arith.constant 0 : i32
    return %c0_i32, %c0_i32_0 : i32, i32
  }
  func.func @transform_5(%arg0: i32) -> (i32, i32) {
    %c0_i32 = arith.constant 0 : i32
    %c0_i32_0 = arith.constant 0 : i32
    %c0_i32_1 = arith.constant 0 : i32
    return %c0_i32, %c0_i32_0 : i32, i32
  }
  func.func @transform_6(%arg0: i32) -> (i32, i32) {
    %c0_i32 = arith.constant 0 : i32
    %c0_i32_0 = arith.constant 0 : i32
    %c0_i32_1 = arith.constant 0 : i32
    return %c0_i32, %c0_i32_0 : i32, i32
  }
  func.func @transform_7(%arg0: i32) -> (i32, i32) {
    %c0_i32 = arith.constant 0 : i32
    %c0_i32_0 = arith.constant 0 : i32
    return %c0_i32, %arg0 : i32, i32
  }
}

</mosaic_0001>

<llo_original>
// kernel: tpu_custom_call.1
$region0: #{tpu_custom_call.1}
  #allocation0 [shape = 'u32[]', space=smem, size = 0x4, offset = 0x4, fixed_abs, tag = 'smem constant byte address 0x4 - core index']
  #allocation1 [shape = 'u32[144,128]{1,0:T(1,128)}', space=vmem, size = 0x12000, scoped, tag = 'internal scratch']
  %s0 = inlined_call_operand.vmem [shape: bf16[4,128], index: 0, kind: input, shape index: {}]
  %s1 = inlined_call_operand.vmem [shape: bf16[16,4], index: 1, kind: input, shape index: {}]
  %s2 = inlined_call_operand.vmem [shape: f32[16,1], index: 2, kind: input, shape index: {}]
  %s3 = inlined_call_operand.vmem [shape: bf16[32,16], index: 3, kind: input, shape index: {}]
  %s4 = inlined_call_operand.vmem [shape: f32[32,1], index: 4, kind: input, shape index: {}]
  %s5 = inlined_call_operand.vmem [shape: bf16[3,32], index: 5, kind: input, shape index: {}]
  %s6 = inlined_call_operand.vmem [shape: f32[3,1], index: 6, kind: input, shape index: {}]
  %s7 = inlined_call_operand.hbm [shape: f32[3,128], index: 7, kind: output, shape index: {}]
  %s8 = sld [smem:[#allocation0]]
  $region38: #{tpu_custom_call.1} parent=0
    _
  %s10 = ssub.s32 1, %s8
  %s11 = scalar_select 0, %s10, %s8
  $region1: #{tpu_custom_call.1} parent=0
    #allocation2 [shape = 'u8[2048]{0}', space=vmem, size = 0x800, scoped, tag = 'output window, operand 0, single buffered']
    #allocation3 [shape = 's32[1]{0}', space=sflag, size = 0x4, scoped, tag = 'scoped memory for tpu_custom_call.1']
    %12 = vsyncpa [#allocation3], 0
    // Predicated region
    $region2: #{tpu_custom_call.1} parent=1 // pred_check
      _
    $region3: #{tpu_custom_call.1} parent=1 // pred_check_branch
      %14 = sbr.rel (0) target = $region5
    $region4: #{tpu_custom_call.1} parent=1 // pred_region
      _
    $region5: #{tpu_custom_call.1} parent=1 // pred_fallthru
      _
    // Predicated region
    $region6: #{tpu_custom_call.1} parent=1 // pred_check
      _
    $region7: #{tpu_custom_call.1} parent=1 // pred_check_branch
      %16 = sbr.rel (0) target = $region9
    $region8: #{tpu_custom_call.1} parent=1 // pred_region
      _
    $region9: #{tpu_custom_call.1} parent=1 // pred_fallthru
      _
    // Predicated region
    $region10: #{tpu_custom_call.1} parent=1 // pred_check
      _
    $region11: #{tpu_custom_call.1} parent=1 // pred_check_branch
      %18 = sbr.rel (0) target = $region13
    $region12: #{tpu_custom_call.1} parent=1 // pred_region
      _
    $region13: #{tpu_custom_call.1} parent=1 // pred_fallthru
      _
    // Predicated region
    $region14: #{tpu_custom_call.1} parent=1 // pred_check
      _
    $region15: #{tpu_custom_call.1} parent=1 // pred_check_branch
      %20 = sbr.rel (0) target = $region17
    $region16: #{tpu_custom_call.1} parent=1 // pred_region
      _
    $region17: #{tpu_custom_call.1} parent=1 // pred_fallthru
      _
    // Predicated region
    $region18: #{tpu_custom_call.1} parent=1 // pred_check
      _
    $region19: #{tpu_custom_call.1} parent=1 // pred_check_branch
      %22 = sbr.rel (0) target = $region21
    $region20: #{tpu_custom_call.1} parent=1 // pred_region
      _
    $region21: #{tpu_custom_call.1} parent=1 // pred_fallthru
      _
    // Predicated region
    $region22: #{tpu_custom_call.1} parent=1 // pred_check
      _
    $region23: #{tpu_custom_call.1} parent=1 // pred_check_branch
      %24 = sbr.rel (0) target = $region25
    $region24: #{tpu_custom_call.1} parent=1 // pred_region
      _
    $region25: #{tpu_custom_call.1} parent=1 // pred_fallthru
      _
    // Predicated region
    $region26: #{tpu_custom_call.1} parent=1 // pred_check
      _
    $region27: #{tpu_custom_call.1} parent=1 // pred_check_branch
      %26 = sbr.rel (0) target = $region29
    $region28: #{tpu_custom_call.1} parent=1 // pred_region
      _
    $region29: #{tpu_custom_call.1} parent=1 // pred_fallthru
      _
    %v28 = vld [vmem:[%s0] sm:$0x3]
    %v29 = vld [vmem:[%s1] sm:$0xf]
    %v30 = vld [vmem:[%s1 + $0x4] sm:$0xf]
    %v31 = vld [vmem:[%s2] sm:$0xff]
    %v32 = vld [vmem:[%s2 + $0x8] sm:$0xff]
    %34 = vset.pattern.permute.xlu0 0
    %35 = vperm.xlu0 %34, %v31
    %v36 = vpop.permute.xlu0 %35
    %39 = vset.pattern.permute.xlu0 0
    %40 = vperm.xlu0 %39, %v32
    %v41 = vpop.permute.xlu0 %40
    %v45 = vunpack.c.l.b16 %v29
    %v46 = vunpack.c.l.b16 %v30
    %v47 = vpack.c.b16 %v46, %v45
    %vm48 = vcmask 31744
    %v50 = vsel %vm48, %v47, 0
    %vm52 = vcmask 1041408
    %v54 = vsel %vm52, %v28, 0
    %56 = vmatprep.subr.bf16.mxu0 0
    %57 = vmatpush1.bf16.msra.mxu0 %v54
    %58 = vmatprep.subr.bf16.mxu0 0
    %59 = vmatpush1.bf16.msra.mxu0 0
    %60 = vmatprep.subr.bf16.mxu0 0
    %61 = vmatpush1.bf16.msra.mxu0 0
    %62 = vmatprep.subr.bf16.mxu0 0
    %63 = vmatpush1.bf16.msra.mxu0 0
    %64 = vmatprep.subr.bf16.mxu0 0
    %65 = vmatpush1.bf16.msra.mxu0 0
    %66 = vmatprep.subr.bf16.mxu0 0
    %67 = vmatpush1.bf16.msra.mxu0 0
    %68 = vmatprep.subr.bf16.mxu0 0
    %69 = vmatpush1.bf16.msra.mxu0 0
    %70 = vmatprep.subr.bf16.mxu0 0
    %71 = vmatpush1.bf16.msra.mxu0 0
    %72 = vmatprep.subr.bf16.mxu0 0
    %73 = vmatpush1.bf16.msra.mxu0 0
    %74 = vmatprep.subr.bf16.mxu0 0
    %75 = vmatpush1.bf16.msra.mxu0 0
    %76 = vmatprep.subr.bf16.mxu0 0
    %77 = vmatpush1.bf16.msra.mxu0 0
    %78 = vmatprep.subr.bf16.mxu0 0
    %79 = vmatpush1.bf16.msra.mxu0 0
    %80 = vmatprep.subr.bf16.mxu0 0
    %81 = vmatpush1.bf16.msra.mxu0 0
    %82 = vmatprep.subr.bf16.mxu0 0
    %83 = vmatpush1.bf16.msra.mxu0 0
    %84 = vmatprep.subr.bf16.mxu0 0
    %85 = vmatpush1.bf16.msra.mxu0 0
    %86 = vmatprep.subr.bf16.mxu0 0
    %87 = vmatpush1.bf16.msra.mxu0 0
    %88 = vmatprep.mubr.bf16.mxu0 0
    %89 = vmatmul.mubr.bf16.gmra.mrb[0].mxu0 %v50
    %v90 = vpop.f32.mrb[0].mxu0
    %v91 = vadd.f32 %v36, %v90
    %v92 = vpop.f32.mrb[0].mxu0
    %v93 = vpop.f32.mrb[0].mxu0
    %v94 = vadd.f32 %v41, %v93
    %v95 = vpop.f32.mrb[0].mxu0
    %96 = vdwg.mxu0
    %v97 = vmax.f32 %v91, 0.0
    %v98 = vmax.f32 %v94, 0.0
    %v99 = vpack.c.bf16 %v98, %v97
    %v100 = vld [vmem:[%s3] sm:$0xf]
    %v101 = vld [vmem:[%s3 + $0x4] sm:$0xf]
    %v102 = vld [vmem:[%s3 + $0x8] sm:$0xf]
    %v103 = vld [vmem:[%s3 + $0xc] sm:$0xf]
    %v104 = vld [vmem:[%s4] sm:$0xff]
    %v105 = vld [vmem:[%s4 + $0x8] sm:$0xff]
    %v106 = vld [vmem:[%s4 + $0x10] sm:$0xff]
    %v107 = vld [vmem:[%s4 + $0x18] sm:$0xff]
    %109 = vset.pattern.permute.xlu0 0
    %110 = vperm.xlu0 %109, %v104
    %v111 = vpop.permute.xlu0 %110
    %114 = vset.pattern.permute.xlu0 0
    %115 = vperm.xlu0 %114, %v105
    %v116 = vpop.permute.xlu0 %115
    %119 = vset.pattern.permute.xlu0 0
    %120 = vperm.xlu0 %119, %v106
    %v121 = vpop.permute.xlu0 %120
    %124 = vset.pattern.permute.xlu0 0
    %125 = vperm.xlu0 %124, %v107
    %v126 = vpop.permute.xlu0 %125
    %v132 = vunpack.c.l.b16 %v100
    %v133 = vunpack.c.l.b16 %v101
    %v134 = vunpack.c.l.b16 %v102
    %v135 = vunpack.c.l.b16 %v103
    %v136 = vpack.c.b16 %v133, %v132
    %v137 = vpack.c.b16 %v135, %v134
    %vm138 = vcmask 130048
    %v140 = vsel %vm138, %v136, 0
    %v143 = vsel %vm138, %v137, 0
    %145 = vmatprep.subr.bf16.mxu0 0
    %146 = vmatpush1.bf16.msra.mxu0 %v99
    %147 = vmatprep.subr.bf16.mxu0 0
    %148 = vmatpush1.bf16.msra.mxu0 0
    %149 = vmatprep.subr.bf16.mxu0 0
    %150 = vmatpush1.bf16.msra.mxu0 0
    %151 = vmatprep.subr.bf16.mxu0 0
    %152 = vmatpush1.bf16.msra.mxu0 0
    %153 = vmatprep.subr.bf16.mxu0 0
    %154 = vmatpush1.bf16.msra.mxu0 0
    %155 = vmatprep.subr.bf16.mxu0 0
    %156 = vmatpush1.bf16.msra.mxu0 0
    %157 = vmatprep.subr.bf16.mxu0 0
    %158 = vmatpush1.bf16.msra.mxu0 0
    %159 = vmatprep.subr.bf16.mxu0 0
    %160 = vmatpush1.bf16.msra.mxu0 0
    %161 = vmatprep.subr.bf16.mxu0 0
    %162 = vmatpush1.bf16.msra.mxu0 0
    %163 = vmatprep.subr.bf16.mxu0 0
    %164 = vmatpush1.bf16.msra.mxu0 0
    %165 = vmatprep.subr.bf16.mxu0 0
    %166 = vmatpush1.bf16.msra.mxu0 0
    %167 = vmatprep.subr.bf16.mxu0 0
    %168 = vmatpush1.bf16.msra.mxu0 0
    %169 = vmatprep.subr.bf16.mxu0 0
    %170 = vmatpush1.bf16.msra.mxu0 0
    %171 = vmatprep.subr.bf16.mxu0 0
    %172 = vmatpush1.bf16.msra.mxu0 0
    %173 = vmatprep.subr.bf16.mxu0 0
    %174 = vmatpush1.bf16.msra.mxu0 0
    %175 = vmatprep.subr.bf16.mxu0 0
    %176 = vmatpush1.bf16.msra.mxu0 0
    %177 = vmatprep.mubr.bf16.mxu0 0
    %178 = vmatmul.mubr.bf16.gmra.mrb[0].mxu0 %v140
    %v179 = vpop.f32.mrb[0].mxu0
    %v180 = vadd.f32 %v111, %v179
    %v181 = vpop.f32.mrb[0].mxu0
    %v182 = vpop.f32.mrb[0].mxu0
    %v183 = vadd.f32 %v116, %v182
    %v184 = vpop.f32.mrb[0].mxu0
    %185 = vmatprep.mubr.bf16.mxu0 0
    %186 = vmatmul.mubr.bf16.gmra.mrb[0].mxu0 %v143
    %v187 = vpop.f32.mrb[0].mxu0
    %v188 = vadd.f32 %v121, %v187
    %v189 = vpop.f32.mrb[0].mxu0
    %v190 = vpop.f32.mrb[0].mxu0
    %v191 = vadd.f32 %v126, %v190
    %v192 = vpop.f32.mrb[0].mxu0
    %193 = vdwg.mxu0
    %v194 = vmax.f32 %v180, 0.0
    %v195 = vmax.f32 %v183, 0.0
    %v196 = vmax.f32 %v188, 0.0
    %v197 = vmax.f32 %v191, 0.0
    %v198 = vpack.c.bf16 %v195, %v194
    %v199 = vpack.c.bf16 %v197, %v196
    %v200 = vld [vmem:[%s5] sm:$0x3]
    %v201 = vld [vmem:[%s6] sm:$0x7]
    %203 = vset.pattern.permute.xlu0 0
    %204 = vperm.xlu0 %203, %v201
    %v205 = vpop.permute.xlu0 %204
    %vm207 = vcmask 261120
    %v209 = vsel %vm207, %v200, 0
    %211 = vmatprep.subr.bf16.mxu0 0
    %212 = vmatpush1.bf16.msra.mxu0 %v198
    %213 = vmatprep.subr.bf16.mxu0 0
    %214 = vmatpush1.bf16.msra.mxu0 %v199
    %215 = vmatprep.subr.bf16.mxu0 0
    %216 = vmatpush1.bf16.msra.mxu0 0
    %217 = vmatprep.subr.bf16.mxu0 0
    %218 = vmatpush1.bf16.msra.mxu0 0
    %219 = vmatprep.subr.bf16.mxu0 0
    %220 = vmatpush1.bf16.msra.mxu0 0
    %221 = vmatprep.subr.bf16.mxu0 0
    %222 = vmatpush1.bf16.msra.mxu0 0
    %223 = vmatprep.subr.bf16.mxu0 0
    %224 = vmatpush1.bf16.msra.mxu0 0
    %225 = vmatprep.subr.bf16.mxu0 0
    %226 = vmatpush1.bf16.msra.mxu0 0
    %227 = vmatprep.subr.bf16.mxu0 0
    %228 = vmatpush1.bf16.msra.mxu0 0
    %229 = vmatprep.subr.bf16.mxu0 0
    %230 = vmatpush1.bf16.msra.mxu0 0
    %231 = vmatprep.subr.bf16.mxu0 0
    %232 = vmatpush1.bf16.msra.mxu0 0
    %233 = vmatprep.subr.bf16.mxu0 0
    %234 = vmatpush1.bf16.msra.mxu0 0
    %235 = vmatprep.subr.bf16.mxu0 0
    %236 = vmatpush1.bf16.msra.mxu0 0
    %237 = vmatprep.subr.bf16.mxu0 0
    %238 = vmatpush1.bf16.msra.mxu0 0
    %239 = vmatprep.subr.bf16.mxu0 0
    %240 = vmatpush1.bf16.msra.mxu0 0
    %241 = vmatprep.subr.bf16.mxu0 0
    %242 = vmatpush1.bf16.msra.mxu0 0
    %243 = vmatprep.mubr.bf16.mxu0 0
    %244 = vmatmul.mubr.bf16.gmra.mrb[0].mxu0 %v209
    %v245 = vpop.f32.mrb[0].mxu0
    %v246 = vadd.f32 %v205, %v245
    %v247 = vpop.f32.mrb[0].mxu0
    %v248 = vpop.f32.mrb[0].mxu0
    %v249 = vpop.f32.mrb[0].mxu0
    %250 = vdwg.mxu0
    %251 = vst [vmem:[#allocation2] sm:$0x7] %v246
    // Predicated region
    $region30: #{tpu_custom_call.1} parent=1 // pred_check
      _
    $region31: #{tpu_custom_call.1} parent=1 // pred_check_branch
      %253 = sbr.rel (0) target = $region33
    $region32: #{tpu_custom_call.1} parent=1 // pred_region
      %s255 = ssub.s32 64, 64
      %256 = vsyncadd [#allocation3], %s255
      %s258 = sshll.u32 [#allocation2], 4
      %s259 = int_to_ptr.vmem [resolvable:$true] %s258
      %261 = dma.vmem_to_hbm [thread:$0]  %s259, 64, %s7, [#allocation3]
    $region33: #{tpu_custom_call.1} parent=1 // pred_fallthru
      _
    // Predicated region
    $region34: #{tpu_custom_call.1} parent=1 // pred_check
      _
    $region35: #{tpu_custom_call.1} parent=1 // pred_check_branch
      %263 = sbr.rel (0) target = $region37
    $region36: #{tpu_custom_call.1} parent=1 // pred_region
      %264 = dma.done [#allocation3], 64
    $region37: #{tpu_custom_call.1} parent=1 // pred_fallthru
      _
    %265 = vsyncpa [#allocation3], 1

</llo_original>
